<compile_context>
chip_gen: v7x
topology: tpu7x:2x2x1
jax: 0.10.0
libtpu: 0.0.40
codegen_flags: <defaults>
</compile_context>

<pallas_src>
import jax
import jax.numpy as jnp
from jax.experimental import pallas as pl
from jax.experimental.pallas import tpu as pltpu


# --------------------------------------------------------------------------
# Kernel
# --------------------------------------------------------------------------
def stable_grad_kernel(x_ref, w1t_ref, w1s_ref, b1_ref, out_ref):
    # x:   (TB, D)   input state tile, already in the matmul dtype
    # w1t: (D,  Hp)  = W1^T                (VMEM-resident, matmul dtype)
    # w1s: (Hp, D)   = diag(w2) @ W1       (VMEM-resident, matmul dtype)
    # b1:  (1,  Hp)  first Linear bias     (f32)
    x = x_ref[...]
    w1t = w1t_ref[...]
    w1s = w1s_ref[...]
    b1 = b1_ref[...]

    # z = x @ W1^T + b1  -> (TB, Hp); f32 accumulation on the MXU.
    z = jnp.dot(x, w1t, preferred_element_type=jnp.float32) + b1

    # Elementwise stays f32 (EUP tanh + VPU). Negation and w2 are folded
    # into w1s, so g = t^2 - 1.
    t = jnp.tanh(z)
    g = t * t - 1.0                                   # (TB, Hp)

    # out = (t^2 - 1) @ diag(w2) W1  ==  -dE/dx  -> (TB, D)
    out = jnp.dot(g.astype(w1s.dtype), w1s, preferred_element_type=jnp.float32)
    out_ref[...] = out.astype(out_ref.dtype)


# --------------------------------------------------------------------------
# Wrapper
# --------------------------------------------------------------------------
def _round_up(v, m):
    return ((v + m - 1) // m) * m


def _vmem_budget_and_limit():
    """Generation-aware VMEM budget (for tile picking) and scoped limit."""
    cap = 64 << 20
    try:
        cap = int(pltpu.get_tpu_info().vmem_capacity_bytes)
    except Exception:
        pass
    if cap >= (128 << 20):          # v5e / v6e: 128 MiB physical VMEM
        return 72 << 20, 100 << 20
    # v7x: 64 MiB physical -> keep headroom for Mosaic internal scratch
    return 24 << 20, 40 << 20


def _pick_batch_tile(B, D, Hp, mm_bytes, budget_bytes):
    """Largest batch tile whose working set fits the VMEM budget."""
    b_cap = _round_up(B, 8)
    resident = (
        2 * (D * Hp * mm_bytes)     # W1^T buffer pair
        + 2 * (Hp * D * mm_bytes)   # diag(w2)@W1 buffer pair
        + 2 * (8 * Hp * 4)          # b1 (sublane-padded) buffer pair
    )
    tb = 8
    for cand in (8, 16, 32, 64, 128, 256, 512, 1024, 2048, 4096):
        if cand > b_cap:
            break
        need = (
            2 * cand * D * mm_bytes     # x tile, double buffered
            + 2 * cand * D * 4          # out tile, double buffered
            + resident
            + 3 * cand * Hp * 4         # z / t / g f32 intermediates
            + cand * Hp * mm_bytes      # staging copy of g for the 2nd matmul
        )
        if need <= budget_bytes:
            tb = cand
    # Keep >=2 grid steps when the batch allows it so the "parallel" axis can
    # span both TensorCores on v7x (negligible extra cost on 1-TC chips).
    if b_cap >= 16:
        tb = min(tb, max(8, _round_up(b_cap // 2, 8)))
    return tb


def stable_forward(x, w1, b1, w2, *, matmul_dtype=jnp.float32):
    """out = -grad_x sum_i E(x_i), E(x) = w2 . tanh(x W1^T + b1) + b2."""
    B, D = x.shape
    H = w1.shape[0]
    mm_bytes = jnp.dtype(matmul_dtype).itemsize

    # Only the (tiny, call-invariant) hidden dim is padded; zero-padded hidden
    # units contribute exactly 0 to the gradient (w2 pad is 0).
    Hp = _round_up(H, 128)

    budget, vmem_limit = _vmem_budget_and_limit()
    TB = _pick_batch_tile(B, D, Hp, mm_bytes, budget)
    Bp = _round_up(B, TB)

    # Build the two resident weight tiles in f32, then cast once in the
    # wrapper (no per-step in-kernel casts, no double rounding for bf16).
    w1f = w1.astype(jnp.float32)
    w2f = w2.astype(jnp.float32).reshape(H, 1)
    b1f = b1.astype(jnp.float32).reshape(1, H)

    w1t = jnp.pad(w1f.T, ((0, 0), (0, Hp - H))).astype(matmul_dtype)        # (D, Hp)
    w1s = jnp.pad(w2f * w1f, ((0, Hp - H), (0, 0))).astype(matmul_dtype)    # (Hp, D)
    b1p = jnp.pad(b1f, ((0, 0), (0, Hp - H)))                               # (1, Hp) f32

    xp = x.astype(matmul_dtype)
    if Bp != B:
        xp = jnp.pad(xp, ((0, Bp - B), (0, 0)))

    grid = (Bp // TB,)

    cost = pl.CostEstimate(
        flops=4 * Bp * Hp * D,                               # two matmuls
        transcendentals=Bp * Hp,                             # tanh
        bytes_accessed=(Bp * D * mm_bytes                    # x
                        + Bp * D * 4                         # out
                        + 2 * Hp * D * mm_bytes              # weights
                        + Hp * 4),                           # b1
    )

    out = pl.pallas_call(
        stable_grad_kernel,
        out_shape=jax.ShapeDtypeStruct((Bp, D), jnp.float32),
        grid_spec=pltpu.PrefetchScalarGridSpec(
            num_scalar_prefetch=0,
            grid=grid,
            in_specs=[
                pl.BlockSpec((TB, D), lambda i: (i, 0)),    # x: tiled over batch
                pl.BlockSpec((D, Hp), lambda i: (0, 0)),    # W1^T: VMEM-resident
                pl.BlockSpec((Hp, D), lambda i: (0, 0)),    # diag(w2)W1: VMEM-resident
                pl.BlockSpec((1, Hp), lambda i: (0, 0)),    # b1: VMEM-resident
            ],
            out_specs=pl.BlockSpec((TB, D), lambda i: (i, 0)),
        ),
        compiler_params=pltpu.CompilerParams(
            dimension_semantics=("parallel",),   # megacore-shard the batch axis
            vmem_limit_bytes=vmem_limit,
        ),
        cost_estimate=cost,
    )(xp, w1t, w1s, b1p)

    return out if Bp == B else out[:B]


# TODO(synk): for tiny production batches, fuse several ODE-solver substep
# evaluations of this gradient into one pallas_call with an in-kernel loop so
# x and the weights stay VMEM-resident across evaluations (amortizes launch
# overhead and HBM traffic).


# --------------------------------------------------------------------------
# Pure-JAX reference: -grad_x sum_i E(x_i) via autodiff.
# --------------------------------------------------------------------------
def stable_forward_ref(x, w1, b1, w2, b2):
    def energy_sum(xx):
        h = jnp.tanh(xx @ w1.T + b1)      # (B, H)
        e = h @ w2.T + b2                 # (B, 1)
        return jnp.sum(e)
    return -jax.grad(energy_sum)(x)


if __name__ == "__main__":
    key = jax.random.PRNGKey(0)
    B, D, H = 8, 32, 64     # x.shape[1] must be even (module computes n = D // 2)

    kx, kw1, kb1, kw2, kb2 = jax.random.split(key, 5)
    x = jax.random.normal(kx, (B, D), dtype=jnp.float32)
    # Synthetic parameters for the energy MLP: Linear(D,H) -> Tanh -> Linear(H,1)
    w1 = jax.random.normal(kw1, (H, D), dtype=jnp.float32) * 0.1
    b1 = jax.random.normal(kb1, (1, H), dtype=jnp.float32) * 0.1
    w2 = jax.random.normal(kw2, (1, H), dtype=jnp.float32) * 0.1
    b2 = jax.random.normal(kb2, (1,), dtype=jnp.float32) * 0.1  # drops out of grad

    ref = stable_forward_ref(x, w1, b1, w2, b2)

    # f32 MXU path (tight tolerance).
    out_f32 = jax.block_until_ready(stable_forward(x, w1, b1, w2))
    assert out_f32.shape == (B, D)
    assert jnp.allclose(out_f32, ref, atol=1e-5, rtol=1e-5), "f32 mismatch vs autodiff"

    # bf16 I/O path (bf16 MXU inputs, f32 accumulate / elementwise), looser tolerance.
    out_bf16 = jax.block_until_ready(
        stable_forward(x, w1, b1, w2, matmul_dtype=jnp.bfloat16))
    assert out_bf16.shape == (B, D)
    assert jnp.allclose(out_bf16, ref, atol=2e-2, rtol=2e-2), "bf16 mismatch vs autodiff"

    print("KERNEL_OK")
</pallas_src>

<mosaic_0001>
module attributes {stable_mosaic.version = 11 : i64} {
  func.func @stable_grad_kernel(%arg0: i32, %arg1: memref<8x32xf32, #tpu.memory_space<vmem>>, %arg2: memref<32x128xf32, #tpu.memory_space<vmem>>, %arg3: memref<128x32xf32, #tpu.memory_space<vmem>>, %arg4: memref<1x128xf32, #tpu.memory_space<vmem>>, %arg5: memref<8x32xf32, #tpu.memory_space<vmem>>) attributes {dimension_semantics = [#tpu.dimension_semantics<parallel>], iteration_bounds = array<i64: 1>, scalar_prefetch = 0 : i64, scratch_operands = 0 : i64, tpu.core_type = #tpu.core_type<tc>, window_params = [{transform_indices = @transform_0, window_bounds = array<i64: 8, 32>}, {pipeline_mode = #tpu.pipeline_mode<synchronous>, transform_indices = @transform_1, window_bounds = array<i64: 32, 128>}, {pipeline_mode = #tpu.pipeline_mode<synchronous>, transform_indices = @transform_2, window_bounds = array<i64: 128, 32>}, {pipeline_mode = #tpu.pipeline_mode<synchronous>, transform_indices = @transform_3, window_bounds = array<i64: 1, 128>}, {transform_indices = @transform_4, window_bounds = array<i64: 8, 32>}]} {
    %c0 = arith.constant 0 : index
    %c0_0 = arith.constant 0 : index
    %0 = vector.load %arg1[%c0, %c0_0] : memref<8x32xf32, #tpu.memory_space<vmem>>, vector<8x32xf32>
    %c0_1 = arith.constant 0 : index
    %c0_2 = arith.constant 0 : index
    %1 = vector.load %arg2[%c0_1, %c0_2] : memref<32x128xf32, #tpu.memory_space<vmem>>, vector<32x128xf32>
    %c0_3 = arith.constant 0 : index
    %c0_4 = arith.constant 0 : index
    %2 = vector.load %arg3[%c0_3, %c0_4] : memref<128x32xf32, #tpu.memory_space<vmem>>, vector<128x32xf32>
    %c0_5 = arith.constant 0 : index
    %c0_6 = arith.constant 0 : index
    %3 = vector.load %arg4[%c0_5, %c0_6] : memref<1x128xf32, #tpu.memory_space<vmem>>, vector<1x128xf32>
    %cst = arith.constant dense<0.000000e+00> : vector<8x128xf32>
    %4 = tpu.matmul %0, %1, %cst {dimension_numbers = #tpu.dot_dimension_numbers<[1], [0], [0], [1], [0, 0, 1, 1], [], []>} : vector<8x32xf32>, vector<32x128xf32>, vector<8x128xf32> -> vector<8x128xf32>
    %5 = vector.broadcast %3 : vector<1x128xf32> to vector<8x128xf32>
    %6 = arith.addf %4, %5 : vector<8x128xf32>
    %7 = math.tanh %6 : vector<8x128xf32>
    %8 = arith.mulf %7, %7 : vector<8x128xf32>
    %cst_7 = arith.constant 1.000000e+00 : f32
    %9 = vector.broadcast %cst_7 : f32 to vector<8x128xf32>
    %10 = arith.subf %8, %9 : vector<8x128xf32>
    %cst_8 = arith.constant dense<0.000000e+00> : vector<8x32xf32>
    %11 = tpu.matmul %10, %2, %cst_8 {dimension_numbers = #tpu.dot_dimension_numbers<[1], [0], [0], [1], [0, 0, 1, 1], [], []>} : vector<8x128xf32>, vector<128x32xf32>, vector<8x32xf32> -> vector<8x32xf32>
    %c0_9 = arith.constant 0 : index
    %c0_10 = arith.constant 0 : index
    %12 = vector.load %arg5[%c0_9, %c0_10] : memref<8x32xf32, #tpu.memory_space<vmem>>, vector<8x32xf32>
    tpu.vector_store %arg5[%c0_9, %c0_10], %11 {strides = array<i32>} : memref<8x32xf32, #tpu.memory_space<vmem>>, vector<8x32xf32>,
    return
  }
  func.func @transform_0(%arg0: i32) -> (i32, i32) {
    %c0_i32 = arith.constant 0 : i32
    %c0_i32_0 = arith.constant 0 : i32
    return %arg0, %c0_i32 : i32, i32
  }
  func.func @transform_1(%arg0: i32) -> (i32, i32) {
    %c0_i32 = arith.constant 0 : i32
    %c0_i32_0 = arith.constant 0 : i32
    %c0_i32_1 = arith.constant 0 : i32
    return %c0_i32, %c0_i32_0 : i32, i32
  }
  func.func @transform_2(%arg0: i32) -> (i32, i32) {
    %c0_i32 = arith.constant 0 : i32
    %c0_i32_0 = arith.constant 0 : i32
    %c0_i32_1 = arith.constant 0 : i32
    return %c0_i32, %c0_i32_0 : i32, i32
  }
  func.func @transform_3(%arg0: i32) -> (i32, i32) {
    %c0_i32 = arith.constant 0 : i32
    %c0_i32_0 = arith.constant 0 : i32
    %c0_i32_1 = arith.constant 0 : i32
    return %c0_i32, %c0_i32_0 : i32, i32
  }
  func.func @transform_4(%arg0: i32) -> (i32, i32) {
    %c0_i32 = arith.constant 0 : i32
    %c0_i32_0 = arith.constant 0 : i32
    return %arg0, %c0_i32 : i32, i32
  }
}

</mosaic_0001>

<llo_original>
// kernel: tpu_custom_call.1
$region0: #{tpu_custom_call.1}
  #allocation0 [shape = 'u32[]', space=smem, size = 0x4, offset = 0x4, fixed_abs, tag = 'smem constant byte address 0x4 - core index']
  #allocation1 [shape = 'u32[144,128]{1,0:T(1,128)}', space=vmem, size = 0x12000, scoped, tag = 'internal scratch']
  %s0 = inlined_call_operand.vmem [shape: f32[8,32], index: 0, kind: input, shape index: {}]
  %s1 = inlined_call_operand.vmem [shape: f32[32,128], index: 1, kind: input, shape index: {}]
  %s2 = inlined_call_operand.vmem [shape: f32[128,32], index: 2, kind: input, shape index: {}]
  %s3 = inlined_call_operand.vmem [shape: f32[1,128], index: 3, kind: input, shape index: {}]
  %s4 = inlined_call_operand.hbm [shape: f32[8,32], index: 4, kind: output, shape index: {}]
  %s5 = sld [smem:[#allocation0]]
  $region26: #{tpu_custom_call.1} parent=0
    _
  %s7 = ssub.s32 1, %s5
  %s8 = scalar_select 0, %s7, %s5
  $region1: #{tpu_custom_call.1} parent=0
    #allocation2 [shape = 'u8[4096]{0}', space=vmem, size = 0x1000, scoped, tag = 'output window, operand 0, single buffered']
    #allocation3 [shape = 's32[1]{0}', space=sflag, size = 0x4, scoped, tag = 'scoped memory for tpu_custom_call.1']
    %9 = vsyncpa [#allocation3], 0
    // Predicated region
    $region2: #{tpu_custom_call.1} parent=1 // pred_check
      _
    $region3: #{tpu_custom_call.1} parent=1 // pred_check_branch
      %11 = sbr.rel (0) target = $region5
    $region4: #{tpu_custom_call.1} parent=1 // pred_region
      _
    $region5: #{tpu_custom_call.1} parent=1 // pred_fallthru
      _
    // Predicated region
    $region6: #{tpu_custom_call.1} parent=1 // pred_check
      _
    $region7: #{tpu_custom_call.1} parent=1 // pred_check_branch
      %13 = sbr.rel (0) target = $region9
    $region8: #{tpu_custom_call.1} parent=1 // pred_region
      _
    $region9: #{tpu_custom_call.1} parent=1 // pred_fallthru
      _
    // Predicated region
    $region10: #{tpu_custom_call.1} parent=1 // pred_check
      _
    $region11: #{tpu_custom_call.1} parent=1 // pred_check_branch
      %15 = sbr.rel (0) target = $region13
    $region12: #{tpu_custom_call.1} parent=1 // pred_region
      _
    $region13: #{tpu_custom_call.1} parent=1 // pred_fallthru
      _
    // Predicated region
    $region14: #{tpu_custom_call.1} parent=1 // pred_check
      _
    $region15: #{tpu_custom_call.1} parent=1 // pred_check_branch
      %17 = sbr.rel (0) target = $region17
    $region16: #{tpu_custom_call.1} parent=1 // pred_region
      _
    $region17: #{tpu_custom_call.1} parent=1 // pred_fallthru
      _
    %v18 = vld [vmem:[%s0] sm:$0xff]
    %v19 = vld [vmem:[%s1] sm:$0xff]
    %v20 = vld [vmem:[%s1 + $0x8] sm:$0xff]
    %v21 = vld [vmem:[%s1 + $0x10] sm:$0xff]
    %v22 = vld [vmem:[%s1 + $0x18] sm:$0xff]
    %v23 = vld [vmem:[%s2] sm:$0xff]
    %v24 = vld [vmem:[%s2 + $0x8] sm:$0xff]
    %v25 = vld [vmem:[%s2 + $0x10] sm:$0xff]
    %v26 = vld [vmem:[%s2 + $0x18] sm:$0xff]
    %v27 = vld [vmem:[%s2 + $0x20] sm:$0xff]
    %v28 = vld [vmem:[%s2 + $0x28] sm:$0xff]
    %v29 = vld [vmem:[%s2 + $0x30] sm:$0xff]
    %v30 = vld [vmem:[%s2 + $0x38] sm:$0xff]
    %v31 = vld [vmem:[%s2 + $0x40] sm:$0xff]
    %v32 = vld [vmem:[%s2 + $0x48] sm:$0xff]
    %v33 = vld [vmem:[%s2 + $0x50] sm:$0xff]
    %v34 = vld [vmem:[%s2 + $0x58] sm:$0xff]
    %v35 = vld [vmem:[%s2 + $0x60] sm:$0xff]
    %v36 = vld [vmem:[%s2 + $0x68] sm:$0xff]
    %v37 = vld [vmem:[%s2 + $0x70] sm:$0xff]
    %v38 = vld [vmem:[%s2 + $0x78] sm:$0xff]
    %v39 = vld [vmem:[%s3] sm:$0x1]
    %v41 = vlaneseq
    %v42 = vshrl.u32 %v41, 7
    %v43 = vsub.s32 0, %v42
    %v44 = vrot.slane %v39, %v43
    %vm46 = vcmask 261120
    %v48 = vsel %vm46, %v18, 0
    %50 = vmatprep.subr.mxu0 0.0
    %51 = vmatpush1.msra.mxu0 %v19
    %52 = vmatprep.subr.mxu0 0.0
    %53 = vmatpush1.msra.mxu0 %v20
    %54 = vmatprep.subr.mxu0 0.0
    %55 = vmatpush1.msra.mxu0 %v21
    %56 = vmatprep.subr.mxu0 0.0
    %57 = vmatpush1.msra.mxu0 %v22
    %58 = vmatprep.subr.mxu0 0.0
    %59 = vmatpush1.msra.mxu0 0.0
    %60 = vmatprep.subr.mxu0 0.0
    %61 = vmatpush1.msra.mxu0 0.0
    %62 = vmatprep.subr.mxu0 0.0
    %63 = vmatpush1.msra.mxu0 0.0
    %64 = vmatprep.subr.mxu0 0.0
    %65 = vmatpush1.msra.mxu0 0.0
    %66 = vmatprep.subr.mxu0 0.0
    %67 = vmatpush1.msra.mxu0 0.0
    %68 = vmatprep.subr.mxu0 0.0
    %69 = vmatpush1.msra.mxu0 0.0
    %70 = vmatprep.subr.mxu0 0.0
    %71 = vmatpush1.msra.mxu0 0.0
    %72 = vmatprep.subr.mxu0 0.0
    %73 = vmatpush1.msra.mxu0 0.0
    %74 = vmatprep.subr.mxu0 0.0
    %75 = vmatpush1.msra.mxu0 0.0
    %76 = vmatprep.subr.mxu0 0.0
    %77 = vmatpush1.msra.mxu0 0.0
    %78 = vmatprep.subr.mxu0 0.0
    %79 = vmatpush1.msra.mxu0 0.0
    %80 = vmatprep.subr.mxu0 0.0
    %81 = vmatpush1.msra.mxu0 0.0
    %82 = vmatprep.subr.mxu0 0.0
    %83 = vmatpush1.msra.mxu0 0.0
    %84 = vmatprep.subr.mxu0 0.0
    %85 = vmatpush1.msra.mxu0 0.0
    %86 = vmatprep.subr.mxu0 0.0
    %87 = vmatpush1.msra.mxu0 0.0
    %88 = vmatprep.subr.mxu0 0.0
    %89 = vmatpush1.msra.mxu0 0.0
    %90 = vmatprep.subr.mxu0 0.0
    %91 = vmatpush1.msra.mxu0 0.0
    %92 = vmatprep.subr.mxu0 0.0
    %93 = vmatpush1.msra.mxu0 0.0
    %94 = vmatprep.subr.mxu0 0.0
    %95 = vmatpush1.msra.mxu0 0.0
    %96 = vmatprep.subr.mxu0 0.0
    %97 = vmatpush1.msra.mxu0 0.0
    %98 = vmatprep.subr.mxu0 0.0
    %99 = vmatpush1.msra.mxu0 0.0
    %100 = vmatprep.subr.mxu0 0.0
    %101 = vmatpush1.msra.mxu0 0.0
    %102 = vmatprep.subr.mxu0 0.0
    %103 = vmatpush1.msra.mxu0 0.0
    %104 = vmatprep.subr.mxu0 0.0
    %105 = vmatpush1.msra.mxu0 0.0
    %106 = vmatprep.subr.mxu0 0.0
    %107 = vmatpush1.msra.mxu0 0.0
    %108 = vmatprep.subr.mxu0 0.0
    %109 = vmatpush1.msra.mxu0 0.0
    %110 = vmatprep.subr.mxu0 0.0
    %111 = vmatpush1.msra.mxu0 0.0
    %112 = vmatprep.subr.mxu0 0.0
    %113 = vmatpush1.msra.mxu0 0.0
    %114 = vmatprep.mubr.f32.mxu0 0.0
    %115 = vmatmul.mubr.f32.gmra.mrb[0].mxu0 %v48
    %v116 = vpop.f32.mrb[0].mxu0
    %v117 = vadd.f32 %v44, %v116
    %v118 = vpop.f32.mrb[0].mxu0
    %119 = vdwg.mxu0
    %v120 = vtanh.pop %v117
    %v121 = vmul.f32 %v120, %v120
    %v122 = vsub.f32 %v121, 1.0
    %123 = vmatprep.subr.mxu0 0.0
    %124 = vmatpush1.msra.mxu0 %v23
    %125 = vmatprep.subr.mxu0 0.0
    %126 = vmatpush1.msra.mxu0 %v24
    %127 = vmatprep.subr.mxu0 0.0
    %128 = vmatpush1.msra.mxu0 %v25
    %129 = vmatprep.subr.mxu0 0.0
    %130 = vmatpush1.msra.mxu0 %v26
    %131 = vmatprep.subr.mxu0 0.0
    %132 = vmatpush1.msra.mxu0 %v27
    %133 = vmatprep.subr.mxu0 0.0
    %134 = vmatpush1.msra.mxu0 %v28
    %135 = vmatprep.subr.mxu0 0.0
    %136 = vmatpush1.msra.mxu0 %v29
    %137 = vmatprep.subr.mxu0 0.0
    %138 = vmatpush1.msra.mxu0 %v30
    %139 = vmatprep.subr.mxu0 0.0
    %140 = vmatpush1.msra.mxu0 %v31
    %141 = vmatprep.subr.mxu0 0.0
    %142 = vmatpush1.msra.mxu0 %v32
    %143 = vmatprep.subr.mxu0 0.0
    %144 = vmatpush1.msra.mxu0 %v33
    %145 = vmatprep.subr.mxu0 0.0
    %146 = vmatpush1.msra.mxu0 %v34
    %147 = vmatprep.subr.mxu0 0.0
    %148 = vmatpush1.msra.mxu0 %v35
    %149 = vmatprep.subr.mxu0 0.0
    %150 = vmatpush1.msra.mxu0 %v36
    %151 = vmatprep.subr.mxu0 0.0
    %152 = vmatpush1.msra.mxu0 %v37
    %153 = vmatprep.subr.mxu0 0.0
    %154 = vmatpush1.msra.mxu0 %v38
    %155 = vmatprep.subr.mxu0 0.0
    %156 = vmatpush1.msra.mxu0 0.0
    %157 = vmatprep.subr.mxu0 0.0
    %158 = vmatpush1.msra.mxu0 0.0
    %159 = vmatprep.subr.mxu0 0.0
    %160 = vmatpush1.msra.mxu0 0.0
    %161 = vmatprep.subr.mxu0 0.0
    %162 = vmatpush1.msra.mxu0 0.0
    %163 = vmatprep.subr.mxu0 0.0
    %164 = vmatpush1.msra.mxu0 0.0
    %165 = vmatprep.subr.mxu0 0.0
    %166 = vmatpush1.msra.mxu0 0.0
    %167 = vmatprep.subr.mxu0 0.0
    %168 = vmatpush1.msra.mxu0 0.0
    %169 = vmatprep.subr.mxu0 0.0
    %170 = vmatpush1.msra.mxu0 0.0
    %171 = vmatprep.subr.mxu0 0.0
    %172 = vmatpush1.msra.mxu0 0.0
    %173 = vmatprep.subr.mxu0 0.0
    %174 = vmatpush1.msra.mxu0 0.0
    %175 = vmatprep.subr.mxu0 0.0
    %176 = vmatpush1.msra.mxu0 0.0
    %177 = vmatprep.subr.mxu0 0.0
    %178 = vmatpush1.msra.mxu0 0.0
    %179 = vmatprep.subr.mxu0 0.0
    %180 = vmatpush1.msra.mxu0 0.0
    %181 = vmatprep.subr.mxu0 0.0
    %182 = vmatpush1.msra.mxu0 0.0
    %183 = vmatprep.subr.mxu0 0.0
    %184 = vmatpush1.msra.mxu0 0.0
    %185 = vmatprep.subr.mxu0 0.0
    %186 = vmatpush1.msra.mxu0 0.0
    %187 = vmatprep.mubr.f32.mxu0 0.0
    %188 = vmatmul.mubr.f32.gmra.mrb[0].mxu0 %v122
    %v189 = vpop.f32.mrb[0].mxu0
    %v190 = vadd.f32 0.0, %v189
    %v191 = vpop.f32.mrb[0].mxu0
    %192 = vdwg.mxu0
    %193 = vst.msk [vmem:[#allocation2] sm:$0xff] %vm46, %v190
    // Predicated region
    $region18: #{tpu_custom_call.1} parent=1 // pred_check
      _
    $region19: #{tpu_custom_call.1} parent=1 // pred_check_branch
      %195 = sbr.rel (0) target = $region21
    $region20: #{tpu_custom_call.1} parent=1 // pred_region
      %s197 = ssub.s32 128, 128
      %198 = vsyncadd [#allocation3], %s197
      %s200 = sshll.u32 [#allocation2], 4
      %s201 = int_to_ptr.vmem [resolvable:$true] %s200
      %203 = dma.vmem_to_hbm [thread:$0]  %s201, 128, %s4, [#allocation3]
    $region21: #{tpu_custom_call.1} parent=1 // pred_fallthru
      _
    // Predicated region
    $region22: #{tpu_custom_call.1} parent=1 // pred_check
      _
    $region23: #{tpu_custom_call.1} parent=1 // pred_check_branch
      %205 = sbr.rel (0) target = $region25
    $region24: #{tpu_custom_call.1} parent=1 // pred_region
      %206 = dma.done [#allocation3], 128
    $region25: #{tpu_custom_call.1} parent=1 // pred_fallthru
      _
    %207 = vsyncpa [#allocation3], 1

</llo_original>
